<compile_context>
chip_gen: v5e
topology: v5e:2x2
jax: 0.10.0
libtpu: 0.0.40
codegen_flags: <defaults>
</compile_context>

<pallas_src>
import math

import numpy as np
import jax
import jax.numpy as jnp
from jax.experimental import pallas as pl
from jax.experimental.pallas import tpu as pltpu

START, STOP, STEP = 0, 8, 1          # module defaults
NF = len(range(START, STOP, STEP))
_TWO_PI = 2.0 * math.pi


def _fourier_kernel(x_ref, o_ref):
    # x_ref: (1, tC, tT)        original channels (NOT repeat_interleaved)
    # o_ref: (1, 2, tC*NF, tT)  [:,0,...] = sin rows, [:,1,...] = cos rows
    _, tc, tt = x_ref.shape

    # All math in float32 regardless of I/O dtype (bf16 phases at 2**7*2*pi*x
    # would be noise; v5e has no bf16 VPU/EUP path anyway).
    x = x_ref[...].astype(jnp.float32)                       # (1, tC, tT)

    # Base octave: theta_0 = 2**START * 2*pi * x.  Only these two
    # transcendentals hit the EUP; the remaining octaves come from the
    # double-angle recurrence (pure VPU mul/fma work).
    theta0 = x * jnp.float32((2.0 ** START) * _TWO_PI)
    s = jnp.sin(theta0)
    c = jnp.cos(theta0)

    sins, coss = [], []
    for i in range(NF):
        sins.append(s)
        coss.append(c)
        if i + 1 < NF:
            for _ in range(STEP):                            # STEP doublings per freq step
                s, c = 2.0 * s * c, 2.0 * c * c - 1.0

    # Interleave octaves after channels: output row = ch*NF + f, which matches
    # repeat_interleave(NF, dim=-2) * tiled-w in the torch module.  NF == 8
    # rows per channel is exactly one f32 sublane tile, so the merge is cheap.
    sin_blk = jnp.stack(sins, axis=2).reshape(1, tc * NF, tt)
    cos_blk = jnp.stack(coss, axis=2).reshape(1, tc * NF, tt)

    o_ref[:, 0, :, :] = sin_blk.astype(o_ref.dtype)
    o_ref[:, 1, :, :] = cos_blk.astype(o_ref.dtype)


def _pick_tiles(C, T, in_itemsize, out_itemsize):
    """Channel tile (sublane-aligned or full C) and lane-dense time tile whose
    double-buffered I/O + f32 temporaries fit a v5e-safe VMEM budget."""
    tC = C if C <= 32 else 32            # boundary blocks padded/masked if C % 32 != 0

    if T < 128:
        return tC, T                     # full-extent block for short sequences

    budget = 12 << 20                    # bytes; under v5e's 16 MiB scoped default
    tT = 128                             # always-fits fallback (<1 MiB with tC<=32)
    for cand in (1024, 512, 256, 128):
        if cand > T:
            continue
        per_step = (2 * tC * cand * in_itemsize            # input, double-buffered
                    + 4 * tC * NF * cand * out_itemsize    # sin+cos out, double-buffered
                    + 3 * tC * NF * cand * 4)              # f32 in-kernel temporaries
        if per_step <= budget:
            tT = cand
            break
    return tC, tT


def base2_fourier_features(x, out_dtype=None):
    """x: (B, C, T) -> (B, 2*C*NF, T); out_dtype defaults to x.dtype.

    Set out_dtype=jnp.bfloat16 to halve the 16x-inflated HBM writeback (the
    dominant cost on v5e/v6e); values are sin/cos in [-1, 1]."""
    B, C, T = x.shape
    out_dtype = x.dtype if out_dtype is None else jnp.dtype(out_dtype)

    tC, tT = _pick_tiles(C, T,
                         jnp.dtype(x.dtype).itemsize,
                         jnp.dtype(out_dtype).itemsize)
    grid = (B, pl.cdiv(C, tC), pl.cdiv(T, tT))

    out4 = pl.pallas_call(
        _fourier_kernel,
        out_shape=jax.ShapeDtypeStruct((B, 2, C * NF, T), out_dtype),
        grid=grid,
        in_specs=[
            pl.BlockSpec((1, tC, tT), lambda b, c, t: (b, c, t)),
        ],
        out_specs=pl.BlockSpec((1, 2, tC * NF, tT), lambda b, c, t: (b, 0, c, t)),
        compiler_params=pltpu.CompilerParams(
            dimension_semantics=("parallel", "parallel", "parallel"),
            vmem_limit_bytes=32 * 1024 * 1024,   # > budget; safe on v5e/v6e/v7x
        ),
    )(x)

    # (B, 2, C*NF, T) -> (B, 2*C*NF, T): contiguous merge of dims 1 and 2, so
    # the reshape is layout-free (no extra HBM pass).
    return out4.reshape(B, 2 * C * NF, T)


def _reference(x):
    """Pure-JAX reference mirroring the torch module (f32 math)."""
    freqs = np.arange(START, STOP, STEP, dtype=np.float32)
    w = jnp.asarray((2.0 ** freqs) * (2.0 * np.pi))            # (NF,)
    w_full = jnp.tile(w, x.shape[-2])                          # (C*NF,)  torch .repeat
    h = jnp.repeat(x.astype(jnp.float32), NF, axis=-2) * w_full[None, :, None]
    out = jnp.concatenate([jnp.sin(h), jnp.cos(h)], axis=-2)
    return out.astype(x.dtype)


if __name__ == "__main__":
    # TODO(synk): the torch module's debug print() calls are intentionally not
    # reproduced in the kernel.
    key = jax.random.PRNGKey(0)
    # Small full-extent shape (T=16) + a lane-dense shape (T=256).
    for (B, C, T) in [(2, 4, 16), (2, 4, 256)]:
        key, sub = jax.random.split(key)
        x = 0.1 * jax.random.normal(sub, (B, C, T), dtype=jnp.float32)

        out = jax.block_until_ready(base2_fourier_features(x))
        ref = _reference(x)

        assert out.shape == (B, 2 * C * NF, T), out.shape
        assert out.dtype == x.dtype, out.dtype
        # Tolerance covers the double-angle recurrence vs. f32 range-reduced
        # sin/cos at arguments up to 2**7 * 2*pi * x (~1e-4 worst-case delta).
        np.testing.assert_allclose(np.asarray(out), np.asarray(ref),
                                   rtol=2e-3, atol=2e-3)

    print("KERNEL_OK")
</pallas_src>

<mosaic_0001>
module attributes {stable_mosaic.version = 11 : i64} {
  func.func @_fourier_kernel(%arg0: i32, %arg1: i32, %arg2: i32, %arg3: memref<1x4x16xf32, #tpu.memory_space<vmem>>, %arg4: memref<1x2x32x16xf32, #tpu.memory_space<vmem>>) attributes {dimension_semantics = [#tpu.dimension_semantics<parallel>, #tpu.dimension_semantics<parallel>, #tpu.dimension_semantics<parallel>], iteration_bounds = array<i64: 2, 1, 1>, scalar_prefetch = 0 : i64, scratch_operands = 0 : i64, tpu.core_type = #tpu.core_type<tc>, window_params = [{transform_indices = @transform_0, window_bounds = array<i64: 1, 4, 16>}, {transform_indices = @transform_1, window_bounds = array<i64: 1, 2, 32, 16>}]} {
    %c0 = arith.constant 0 : index
    %c0_0 = arith.constant 0 : index
    %c0_1 = arith.constant 0 : index
    %0 = vector.load %arg3[%c0, %c0_0, %c0_1] : memref<1x4x16xf32, #tpu.memory_space<vmem>>, vector<1x4x16xf32>
    %cst = arith.constant 6.28318548 : f32
    %1 = vector.broadcast %cst : f32 to vector<1x4x16xf32>
    %2 = arith.mulf %0, %1 : vector<1x4x16xf32>
    %3 = math.sin %2 : vector<1x4x16xf32>
    %4 = math.cos %2 : vector<1x4x16xf32>
    %cst_2 = arith.constant 2.000000e+00 : f32
    %5 = vector.broadcast %cst_2 : f32 to vector<1x4x16xf32>
    %6 = arith.mulf %5, %3 : vector<1x4x16xf32>
    %7 = arith.mulf %6, %4 : vector<1x4x16xf32>
    %cst_3 = arith.constant 2.000000e+00 : f32
    %8 = vector.broadcast %cst_3 : f32 to vector<1x4x16xf32>
    %9 = arith.mulf %8, %4 : vector<1x4x16xf32>
    %10 = arith.mulf %9, %4 : vector<1x4x16xf32>
    %cst_4 = arith.constant 1.000000e+00 : f32
    %11 = vector.broadcast %cst_4 : f32 to vector<1x4x16xf32>
    %12 = arith.subf %10, %11 : vector<1x4x16xf32>
    %cst_5 = arith.constant 2.000000e+00 : f32
    %13 = vector.broadcast %cst_5 : f32 to vector<1x4x16xf32>
    %14 = arith.mulf %13, %7 : vector<1x4x16xf32>
    %15 = arith.mulf %14, %12 : vector<1x4x16xf32>
    %cst_6 = arith.constant 2.000000e+00 : f32
    %16 = vector.broadcast %cst_6 : f32 to vector<1x4x16xf32>
    %17 = arith.mulf %16, %12 : vector<1x4x16xf32>
    %18 = arith.mulf %17, %12 : vector<1x4x16xf32>
    %cst_7 = arith.constant 1.000000e+00 : f32
    %19 = vector.broadcast %cst_7 : f32 to vector<1x4x16xf32>
    %20 = arith.subf %18, %19 : vector<1x4x16xf32>
    %cst_8 = arith.constant 2.000000e+00 : f32
    %21 = vector.broadcast %cst_8 : f32 to vector<1x4x16xf32>
    %22 = arith.mulf %21, %15 : vector<1x4x16xf32>
    %23 = arith.mulf %22, %20 : vector<1x4x16xf32>
    %cst_9 = arith.constant 2.000000e+00 : f32
    %24 = vector.broadcast %cst_9 : f32 to vector<1x4x16xf32>
    %25 = arith.mulf %24, %20 : vector<1x4x16xf32>
    %26 = arith.mulf %25, %20 : vector<1x4x16xf32>
    %cst_10 = arith.constant 1.000000e+00 : f32
    %27 = vector.broadcast %cst_10 : f32 to vector<1x4x16xf32>
    %28 = arith.subf %26, %27 : vector<1x4x16xf32>
    %cst_11 = arith.constant 2.000000e+00 : f32
    %29 = vector.broadcast %cst_11 : f32 to vector<1x4x16xf32>
    %30 = arith.mulf %29, %23 : vector<1x4x16xf32>
    %31 = arith.mulf %30, %28 : vector<1x4x16xf32>
    %cst_12 = arith.constant 2.000000e+00 : f32
    %32 = vector.broadcast %cst_12 : f32 to vector<1x4x16xf32>
    %33 = arith.mulf %32, %28 : vector<1x4x16xf32>
    %34 = arith.mulf %33, %28 : vector<1x4x16xf32>
    %cst_13 = arith.constant 1.000000e+00 : f32
    %35 = vector.broadcast %cst_13 : f32 to vector<1x4x16xf32>
    %36 = arith.subf %34, %35 : vector<1x4x16xf32>
    %cst_14 = arith.constant 2.000000e+00 : f32
    %37 = vector.broadcast %cst_14 : f32 to vector<1x4x16xf32>
    %38 = arith.mulf %37, %31 : vector<1x4x16xf32>
    %39 = arith.mulf %38, %36 : vector<1x4x16xf32>
    %cst_15 = arith.constant 2.000000e+00 : f32
    %40 = vector.broadcast %cst_15 : f32 to vector<1x4x16xf32>
    %41 = arith.mulf %40, %36 : vector<1x4x16xf32>
    %42 = arith.mulf %41, %36 : vector<1x4x16xf32>
    %cst_16 = arith.constant 1.000000e+00 : f32
    %43 = vector.broadcast %cst_16 : f32 to vector<1x4x16xf32>
    %44 = arith.subf %42, %43 : vector<1x4x16xf32>
    %cst_17 = arith.constant 2.000000e+00 : f32
    %45 = vector.broadcast %cst_17 : f32 to vector<1x4x16xf32>
    %46 = arith.mulf %45, %39 : vector<1x4x16xf32>
    %47 = arith.mulf %46, %44 : vector<1x4x16xf32>
    %cst_18 = arith.constant 2.000000e+00 : f32
    %48 = vector.broadcast %cst_18 : f32 to vector<1x4x16xf32>
    %49 = arith.mulf %48, %44 : vector<1x4x16xf32>
    %50 = arith.mulf %49, %44 : vector<1x4x16xf32>
    %cst_19 = arith.constant 1.000000e+00 : f32
    %51 = vector.broadcast %cst_19 : f32 to vector<1x4x16xf32>
    %52 = arith.subf %50, %51 : vector<1x4x16xf32>
    %cst_20 = arith.constant 2.000000e+00 : f32
    %53 = vector.broadcast %cst_20 : f32 to vector<1x4x16xf32>
    %54 = arith.mulf %53, %47 : vector<1x4x16xf32>
    %55 = arith.mulf %54, %52 : vector<1x4x16xf32>
    %cst_21 = arith.constant 2.000000e+00 : f32
    %56 = vector.broadcast %cst_21 : f32 to vector<1x4x16xf32>
    %57 = arith.mulf %56, %52 : vector<1x4x16xf32>
    %58 = arith.mulf %57, %52 : vector<1x4x16xf32>
    %cst_22 = arith.constant 1.000000e+00 : f32
    %59 = vector.broadcast %cst_22 : f32 to vector<1x4x16xf32>
    %60 = arith.subf %58, %59 : vector<1x4x16xf32>
    %61 = vector.shape_cast %3 : vector<1x4x16xf32> to vector<1x4x1x16xf32>
    %62 = vector.shape_cast %7 : vector<1x4x16xf32> to vector<1x4x1x16xf32>
    %63 = vector.shape_cast %15 : vector<1x4x16xf32> to vector<1x4x1x16xf32>
    %64 = vector.shape_cast %23 : vector<1x4x16xf32> to vector<1x4x1x16xf32>
    %65 = vector.shape_cast %31 : vector<1x4x16xf32> to vector<1x4x1x16xf32>
    %66 = vector.shape_cast %39 : vector<1x4x16xf32> to vector<1x4x1x16xf32>
    %67 = vector.shape_cast %47 : vector<1x4x16xf32> to vector<1x4x1x16xf32>
    %68 = vector.shape_cast %55 : vector<1x4x16xf32> to vector<1x4x1x16xf32>
    %69 = tpu.concatenate %61, %62, %63, %64, %65, %66, %67, %68 in 2 : vector<1x4x1x16xf32>, vector<1x4x1x16xf32>, vector<1x4x1x16xf32>, vector<1x4x1x16xf32>, vector<1x4x1x16xf32>, vector<1x4x1x16xf32>, vector<1x4x1x16xf32>, vector<1x4x1x16xf32> -> vector<1x4x8x16xf32>
    %70 = vector.shape_cast %69 : vector<1x4x8x16xf32> to vector<1x32x16xf32>
    %71 = vector.shape_cast %4 : vector<1x4x16xf32> to vector<1x4x1x16xf32>
    %72 = vector.shape_cast %12 : vector<1x4x16xf32> to vector<1x4x1x16xf32>
    %73 = vector.shape_cast %20 : vector<1x4x16xf32> to vector<1x4x1x16xf32>
    %74 = vector.shape_cast %28 : vector<1x4x16xf32> to vector<1x4x1x16xf32>
    %75 = vector.shape_cast %36 : vector<1x4x16xf32> to vector<1x4x1x16xf32>
    %76 = vector.shape_cast %44 : vector<1x4x16xf32> to vector<1x4x1x16xf32>
    %77 = vector.shape_cast %52 : vector<1x4x16xf32> to vector<1x4x1x16xf32>
    %78 = vector.shape_cast %60 : vector<1x4x16xf32> to vector<1x4x1x16xf32>
    %79 = tpu.concatenate %71, %72, %73, %74, %75, %76, %77, %78 in 2 : vector<1x4x1x16xf32>, vector<1x4x1x16xf32>, vector<1x4x1x16xf32>, vector<1x4x1x16xf32>, vector<1x4x1x16xf32>, vector<1x4x1x16xf32>, vector<1x4x1x16xf32>, vector<1x4x1x16xf32> -> vector<1x4x8x16xf32>
    %80 = vector.shape_cast %79 : vector<1x4x8x16xf32> to vector<1x32x16xf32>
    %c0_23 = arith.constant 0 : index
    %c0_24 = arith.constant 0 : index
    %c0_25 = arith.constant 0 : index
    %c0_26 = arith.constant 0 : index
    %81 = vector.load %arg4[%c0_23, %c0_24, %c0_25, %c0_26] : memref<1x2x32x16xf32, #tpu.memory_space<vmem>>, vector<1x1x32x16xf32>
    %82 = vector.shape_cast %81 : vector<1x1x32x16xf32> to vector<1x32x16xf32>
    %83 = vector.shape_cast %70 : vector<1x32x16xf32> to vector<1x1x32x16xf32>
    tpu.vector_store %arg4[%c0_23, %c0_24, %c0_25, %c0_26], %83 {strides = array<i32>} : memref<1x2x32x16xf32, #tpu.memory_space<vmem>>, vector<1x1x32x16xf32>,
    %c0_27 = arith.constant 0 : index
    %c1 = arith.constant 1 : index
    %c0_28 = arith.constant 0 : index
    %c0_29 = arith.constant 0 : index
    %84 = vector.load %arg4[%c0_27, %c1, %c0_28, %c0_29] : memref<1x2x32x16xf32, #tpu.memory_space<vmem>>, vector<1x1x32x16xf32>
    %85 = vector.shape_cast %84 : vector<1x1x32x16xf32> to vector<1x32x16xf32>
    %86 = vector.shape_cast %80 : vector<1x32x16xf32> to vector<1x1x32x16xf32>
    tpu.vector_store %arg4[%c0_27, %c1, %c0_28, %c0_29], %86 {strides = array<i32>} : memref<1x2x32x16xf32, #tpu.memory_space<vmem>>, vector<1x1x32x16xf32>,
    return
  }
  func.func @transform_0(%arg0: i32, %arg1: i32, %arg2: i32) -> (i32, i32, i32) {
    %c0_i32 = arith.constant 0 : i32
    return %arg0, %arg1, %arg2 : i32, i32, i32
  }
  func.func @transform_1(%arg0: i32, %arg1: i32, %arg2: i32) -> (i32, i32, i32, i32) {
    %c0_i32 = arith.constant 0 : i32
    %c0_i32_0 = arith.constant 0 : i32
    return %arg0, %c0_i32, %arg1, %arg2 : i32, i32, i32, i32
  }
}

</mosaic_0001>

<llo_original>
// kernel: tpu_custom_call.1
$region0: #{tpu_custom_call.1}
  #allocation0 [shape = 'u32[]', space=smem, size = 0x4, offset = 0x4, fixed_abs, tag = 'smem constant byte address 0x4 - core index']
  #allocation1 [shape = 'u32[72,128]{1,0:T(1,128)}', space=vmem, size = 0x9000, scoped, tag = 'internal scratch']
  %s0 = inlined_call_operand.hbm [shape: f32[2,4,16], index: 0, kind: input, shape index: {}]
  %s1 = inlined_call_operand.vmem [shape: f32[2,2,32,16], index: 1, kind: output, shape index: {}]
  %s2 = sld [smem:[#allocation0]]
  $region41: #{tpu_custom_call.1} parent=0
    _
  %s4 = ssub.s32 1, %s2
  %s5 = scalar_select 0, %s4, %s2
  $region1: #{tpu_custom_call.1} parent=0
    #allocation2 [shape = 'u8[4096]{0}', space=vmem, size = 0x1000, scoped, tag = 'input window, operand 0']
    #allocation3 [shape = 's32[2]{0}', space=sflag, size = 0x8, scoped, tag = 'scoped memory for tpu_custom_call.1']
    %6 = vsyncpa [#allocation3], 0
    %s7 = scalar_lea.sflag [#allocation3], 1
    %8 = vsyncpa %s7, 0
    loop: start=0, step=1, limit=4
    $region2: #{tpu_custom_call.1} parent=1 // loop_pre_header
      _
    $region3: #{tpu_custom_call.1} parent=1 // loop_header
      %s10 = sphi 0, %s14
      %p11 = scmp.ge.s32.totalorder %s10, 4
      %s17 = sphi 0, %s36
      %s18 = sphi 0, %s32
      %s19 = sphi 0, %s28
      %s20 = sphi 0, %s17
      %s21 = sphi 0, %s18
      %s22 = sphi 0, %s19
      %s23 = sphi 0, %s20
      %s24 = sphi 0, %s21
      %s25 = sphi 0, %s22
      %s43 = sphi 0, %s45
      %s46 = sphi 0, %s43
      %s47 = sphi 0, %s46
      %s63 = sphi 0, %s47
      %s73 = sphi 0, %s75
      %s76 = sphi 0, %s73
      %s77 = sphi 0, %s76
      %s93 = sphi 0, %s77
    $region4: #{tpu_custom_call.1} parent=1 // loop_header_branch
      %13 = sbr.rel (%p11) target = $region8
    $region5: #{tpu_custom_call.1} parent=1 // loop_body
      %s15 = ssub.s32 %s10, 1
      %s16 = ssub.s32 %s10, 2
      %s26 = sadd.s32 1, %s19
      %p27 = scmp.ge.s32.totalorder %s26, 1
      %s28 = scalar_select %p27, 0, %s26
      %s29 = sadd.s32 1, %s18
      %s30 = scalar_select %p27, %s29, %s18
      %p31 = scmp.ge.s32.totalorder %s30, 1
      %s32 = scalar_select %p31, 0, %s30
      %s33 = sadd.s32 1, %s17
      %s34 = scalar_select %p31, %s33, %s17
      %p35 = scmp.ge.s32.totalorder %s34, 2
      %s36 = scalar_select %p35, 0, %s34
      %s37 = ssub.s32 %s17, %s36
      %s38 = ssub.s32 %s18, %s32
      %s39 = sor.u32 %s37, %s38
      %s40 = ssub.s32 %s19, %s28
      %s41 = sor.u32 %s39, %s40
      %p42 = scmp.eq.s32.totalorder %s41, 0
      %s44 = sadd.s32 %s43, 1
      %s45 = scalar_select %p42, %s43, %s44
      %p48 = pneg %p42
      %p49 = scmp.eq.s32.totalorder %s10, 1
      %p50 = por %p48, %p49
      %p51 = scmp.ne.s32.totalorder %s43, %s46
      %p52 = scmp.eq.s32.totalorder %s10, 0
      %p53 = por %p51, %p52
      %p54 = scmp.ne.s32.totalorder %s43, %s46
      %p55 = scmp.eq.s32.totalorder %s15, 1
      %p56 = por %p54, %p55
      %p57 = scmp.ne.s32.totalorder %s46, %s47
      %p58 = scmp.eq.s32.totalorder %s15, 0
      %p59 = por %p57, %p58
      %p60 = scmp.ne.s32.totalorder %s46, %s47
      %p61 = scmp.eq.s32.totalorder %s16, 1
      %p62 = por %p60, %p61
      %p64 = scmp.ne.s32.totalorder %s47, %s63
      %p65 = scmp.eq.s32.totalorder %s16, 0
      %p66 = por %p64, %p65
      %s67 = ssub.s32 %s17, %s36
      %s68 = ssub.s32 %s18, %s32
      %s69 = sor.u32 %s67, %s68
      %s70 = ssub.s32 %s19, %s28
      %s71 = sor.u32 %s69, %s70
      %p72 = scmp.eq.s32.totalorder %s71, 0
      %s74 = sadd.s32 %s73, 1
      %s75 = scalar_select %p72, %s73, %s74
      %p78 = pneg %p72
      %p79 = scmp.eq.s32.totalorder %s10, 1
      %p80 = por %p78, %p79
      %p81 = scmp.ne.s32.totalorder %s73, %s76
      %p82 = scmp.eq.s32.totalorder %s10, 0
      %p83 = por %p81, %p82
      %p84 = scmp.ne.s32.totalorder %s73, %s76
      %p85 = scmp.eq.s32.totalorder %s15, 1
      %p86 = por %p84, %p85
      %p87 = scmp.ne.s32.totalorder %s76, %s77
      %p88 = scmp.eq.s32.totalorder %s15, 0
      %p89 = por %p87, %p88
      %p90 = scmp.ne.s32.totalorder %s76, %s77
      %p91 = scmp.eq.s32.totalorder %s16, 1
      %p92 = por %p90, %p91
      %p94 = scmp.ne.s32.totalorder %s77, %s93
      %p95 = scmp.eq.s32.totalorder %s16, 0
      %p96 = por %p94, %p95
      %p97 = scmp.le.s32.totalorder 1, %s10
      %p98 = scmp.lt.s32.totalorder %s10, 3
      %p99 = pnand %p97, %p98
      %p100 = pneg %p99
      // Predicated region
      $region9: #{tpu_custom_call.1} parent=5 // pred_check
        _
      $region10: #{tpu_custom_call.1} parent=5 // pred_check_branch
        %102 = sbr.rel (%p99) target = $region12
      $region11: #{tpu_custom_call.1} parent=5 // pred_region
        %s103 = ssub.s32 %s10, 1
      $region12: #{tpu_custom_call.1} parent=5 // pred_fallthru
        _
      %p104 = scmp.lt.s32.totalorder %s10, 2
      // Predicated region
      $region13: #{tpu_custom_call.1} parent=5 // pred_check
        %p105 = pneg %p104
      $region14: #{tpu_custom_call.1} parent=5 // pred_check_branch
        %107 = sbr.rel (%p105) target = $region16
      $region15: #{tpu_custom_call.1} parent=5 // pred_region
        // Predicated region
        $region17: #{tpu_custom_call.1} parent=15 // pred_check
          %p108 = pneg %p53
        $region18: #{tpu_custom_call.1} parent=15 // pred_check_branch
          %110 = sbr.rel (%p108) target = $region20
        $region19: #{tpu_custom_call.1} parent=15 // pred_region
          %s111 = sand.u32 %s43, 1
          %s112 = scalar_lea.sflag [#allocation3], %s111
          %s113 = sand.u32 %s43, 1
          %s114 = smul.addr %s113, 4
          %s115 = scalar_lea.vmem [#allocation2], %s114
          %117 = vsyncadd %s112, 0
          %s118 = sadd.s32 %s19, %s18
          %s119 = sadd.s32 %s118, %s17
          %s120 = smul.addr %s119, 4
          %s121 = scalar_lea.hbm %s0, %s120
          %s123 = sshll.u32 %s121, 4
          %s124 = int_to_ptr.hbm [resolvable:$true] %s123
          %s125 = sshll.u32 %s115, 4
          %s126 = int_to_ptr.vmem [resolvable:$true] %s125
          %128 = dma.hbm_to_vmem [thread:$0]  %s124, 64, %s126, %s112
        $region20: #{tpu_custom_call.1} parent=15 // pred_fallthru
          _
      $region16: #{tpu_custom_call.1} parent=5 // pred_fallthru
        _
      %p129 = scmp.le.s32.totalorder 1, %s10
      %p130 = scmp.lt.s32.totalorder %s10, 3
      %p131 = pnand %p129, %p130
      %p132 = pneg %p131
      // Predicated region
      $region21: #{tpu_custom_call.1} parent=5 // pred_check
        _
      $region22: #{tpu_custom_call.1} parent=5 // pred_check_branch
        %134 = sbr.rel (%p131) target = $region24
      $region23: #{tpu_custom_call.1} parent=5 // pred_region
        %s135 = ssub.s32 %s10, 1
        %s136 = sand.u32 %s46, 1
        %s137 = scalar_lea.sflag [#allocation3], %s136
        %s138 = sand.u32 %s46, 1
        %s139 = smul.addr %s138, 4
        %s140 = scalar_lea.vmem [#allocation2], %s139
        // Predicated region
        $region25: #{tpu_custom_call.1} parent=23 // pred_check
          %p141 = pneg %p59
        $region26: #{tpu_custom_call.1} parent=23 // pred_check_branch
          %143 = sbr.rel (%p141) target = $region28
        $region27: #{tpu_custom_call.1} parent=23 // pred_region
          %145 = dma.done %s137, 64
        $region28: #{tpu_custom_call.1} parent=23 // pred_fallthru
          _
        %s146 = sand.u32 %s46, 1
        %s147 = scalar_lea.sflag [#allocation3], %s146
        %s148 = sand.u32 %s46, 1
        %s149 = smul.addr %s148, 4
        %s150 = scalar_lea.vmem [#allocation2], %s149
        %p151 = pneg %p59
        %p152 = pneg %p56
        %p153 = pneg %p89
        %p154 = pneg %p86
        %s155 = smul.u32 4, %s21
        %p156 = scmp.lt.s32.totalorder %s20, 1
        %s157 = scalar_select %p156, %s20, 1
        %p158 = scmp.lt.s32.totalorder %s155, 3
        %s159 = scalar_select %p158, %s155, 3
        %p160 = scmp.lt.s32.totalorder %s22, 0
        %s161 = scalar_select %p160, %s22, 0
        %s162 = sadd.s32 %s161, %s159
        %s163 = smul.addr %s157, 8
        %s164 = sadd.s32 %s162, %s163
        %s165 = smul.addr %s164, 8
        %s166 = scalar_lea.vmem %s1, %s165
        %s167 = smul.u32 4, %s21
        %p168 = scmp.lt.s32.totalorder %s20, 1
        %s169 = scalar_select %p168, %s20, 1
        %p170 = scmp.lt.s32.totalorder %s167, 3
        %s171 = scalar_select %p170, %s167, 3
        %p172 = scmp.lt.s32.totalorder %s22, 0
        %s173 = scalar_select %p172, %s22, 0
        %s174 = sadd.s32 %s173, %s171
        %s175 = smul.addr %s169, 8
        %s176 = sadd.s32 %s174, %s175
        %s177 = smul.addr %s176, 8
        %s178 = scalar_lea.vmem %s1, %s177
        %s179 = smul.u32 4, %s21
        %v180 = vld [vmem:[%s140] sm:$0xf]
        %v181 = vmul.f32 %v180, 6.2831855
        %v182 = vand.u32 2147483647, %v181
        %vm183 = vcmp.le.f32.partialorder %v182, 0.7853982
        %vm184 = vcmp.lt.s32.totalorder %v181, 0
        %v185 = vand.u32 %v181, 2139095040
        %v186 = vshrl.u32 %v185, 23
        %v187 = vsub.s32 %v186, 127
        %v188 = vand.u32 2147483647, %v181
        %v189 = vand.u32 %v188, 8388607
        %v190 = vor.u32 %v189, 8388608
        %v191 = vsub.s32 0, %v190
        %v192 = vadd.s32 %v187, 1
        %vm193 = vcmp.gt.s32.totalorder %v192, 0
        %v194 = vsel %vm193, %v192, 0
        %v195 = vshrl.u32 %v194, 5
        %v196 = vand.u32 %v194, 31
        %v197 = vsub.s32 32, %v196
        %v198 = vshrl.u32 683565275, %v197
        %v199 = vshll.u32 683565275, %v196
        %v200 = vshrl.u32 2475754826, %v197
        %v201 = vor.u32 %v199, %v200
        %v202 = vshll.u32 2475754826, %v196
        %v203 = vshrl.u32 2131351028, %v197
        %v204 = vor.u32 %v202, %v203
        %v205 = vshll.u32 2131351028, %v196
        %v206 = vshrl.u32 2102212464, %v197
        %v207 = vor.u32 %v205, %v206
        %v208 = vshll.u32 2102212464, %v196
        %v209 = vshrl.u32 920167782, %v197
        %v210 = vor.u32 %v208, %v209
        %v211 = vshll.u32 920167782, %v196
        %v212 = vshrl.u32 1326507024, %v197
        %v213 = vor.u32 %v211, %v212
        %vm214 = vcmp.lt.s32.totalorder %v195, 1
        %vm215 = vcmp.lt.s32.totalorder %v195, 2
        %vm216 = vcmp.lt.s32.totalorder %v195, 3
        %vm217 = vcmp.lt.s32.totalorder %v195, 4
        %v218 = vsel %vm214, %v198, %v201
        %v219 = vsel %vm217, %v207, 2102212464
        %v220 = vsel %vm216, %v204, %v219
        %v221 = vsel %vm215, %v218, %v220
        %v222 = vsel %vm214, %v201, %v204
        %v223 = vsel %vm217, %v210, 920167782
        %v224 = vsel %vm216, %v207, %v223
        %v225 = vsel %vm215, %v222, %v224
        %v226 = vsel %vm214, %v204, %v207
        %v227 = vsel %vm217, %v213, 1326507024
        %v228 = vsel %vm216, %v210, %v227
        %v229 = vsel %vm215, %v226, %v228
        %v230 = vshll.u32 %v190, 8
        %v231 = vand.u32 %v230, 65535
        %v232 = vshrl.u32 %v230, 16
        %v233 = vand.u32 %v229, 65535
        %v234 = vshrl.u32 %v229, 16
        %v235 = vmul.u32 %v231, %v233
        %v236 = vmul.u32 %v231, %v234
        %v237 = vmul.u32 %v232, %v233
        %v238 = vmul.u32 %v232, %v234
        %v239 = vshll.u32 %v236, 16
        %v240 = vshrl.u32 %v236, 16
        %v241 = vshll.u32 %v237, 16
        %v242 = vshrl.u32 %v237, 16
        %vm243 = vc.u32 %v235, %v239
        %v244 = vsel %vm243, 1, 0
        %v245 = vadd.s32 %v235, %v239
        %v246 = vadd.s32 %v238, %v244
        %vm247 = vc.u32 %v245, %v241
        %v248 = vsel %vm247, 1, 0
        %v249 = vadd.s32 %v245, %v241
        %v250 = vadd.s32 %v246, %v248
        %v251 = vadd.s32 %v250, %v240
        %v252 = vadd.s32 %v251, %v242
        %v253 = vand.u32 %v230, 65535
        %v254 = vshrl.u32 %v230, 16
        %v255 = vand.u32 %v225, 65535
        %v256 = vshrl.u32 %v225, 16
        %v257 = vmul.u32 %v253, %v255
        %v258 = vmul.u32 %v253, %v256
        %v259 = vmul.u32 %v254, %v255
        %v260 = vmul.u32 %v254, %v256
        %v261 = vshll.u32 %v258, 16
        %v262 = vshrl.u32 %v258, 16
        %v263 = vshll.u32 %v259, 16
        %v264 = vshrl.u32 %v259, 16
        %vm265 = vc.u32 %v257, %v261
        %v266 = vsel %vm265, 1, 0
        %v267 = vadd.s32 %v257, %v261
        %v268 = vadd.s32 %v260, %v266
        %vm269 = vc.u32 %v267, %v263
        %v270 = vsel %vm269, 1, 0
        %v271 = vadd.s32 %v267, %v263
        %v272 = vadd.s32 %v268, %v270
        %v273 = vadd.s32 %v272, %v262
        %v274 = vadd.s32 %v273, %v264
        %v275 = vmul.u32 %v230, %v221
        %v276 = vadd.s32 %v252, %v271
        %vm277 = vc.u32 %v252, %v271
        %v278 = vadd.s32 %v274, 1
        %v279 = vsel %vm277, %v278, %v274
        %v280 = vadd.s32 %v275, %v279
        %v281 = vadd.s32 %v280, 536870912
        %v282 = vshrl.u32 %v281, 30
        %v283 = vshll.u32 %v282, 30
        %v284 = vsub.s32 %v280, %v283
        %vm285 = vcmp.lt.s32.totalorder %v284, 0
        %v286 = vsub.s32 0, %v284
        %v287 = vsel %vm285, %v286, %v284
        %v288 = vclz %v287
        %v289 = vsub.s32 %v288, 2
        %vm290 = vcmp.gt.s32.totalorder 0, %v289
        %v291 = vsel %vm290, 0, %v289
        %v292 = vsub.s32 32, %v291
        %v293 = vshll.u32 %v284, %v291
        %v294 = vshrl.u32 %v276, %v292
        %v295 = vor.u32 %v293, %v294
        %v296 = vsub.s32 4294967266, %v291
        %v297 = vadd.s32 %v296, 127
        %v298 = vshll.u32 %v297, 23
        %v299 = vor.u32 4788187, %v298
        %v300 = vand.u32 2147483647, %v299
        %v302 = vcvt.s32.f32 %v295
        %v303 = vmul.f32 %v302, %v300
        %v304 = vxor.u32 %v303, 2147483648
        %v305 = vsel %vm184, %v304, %v303
        %v306 = vsub.s32 4, %v282
        %v307 = vsel %vm184, %v306, %v282
        %v308 = vsel %vm183, %v181, %v305
        %v309 = vsel %vm183, 0, %v307
        %v310 = vmul.f32 %v308, %v308
        %v311 = vmul.f32 %v310, -0.001358992
        %v312 = vadd.f32 %v311, 0.041655596
        %v313 = vmul.f32 %v310, %v312
        %v314 = vadd.f32 %v313, -0.4999988
        %v315 = vmul.f32 %v310, %v314
        %v316 = vadd.f32 1.0, %v315
        %v317 = vmul.f32 %v308, %v308
        %v318 = vmul.f32 %v317, -0.00019511016
        %v319 = vadd.f32 %v318, 0.008332121
        %v320 = vmul.f32 %v317, %v319
        %v321 = vadd.f32 %v320, -0.16666654
        %v322 = vmul.f32 %v317, %v321
        %v323 = vadd.f32 %v322, 1.0
        %v324 = vmul.f32 %v323, %v308
        %vm325 = vweird.f32 %v181
        %v326 = vadd.s32 %v309, 3
        %v327 = vand.u32 %v326, 3
        %vm328 = vcmp.lt.s32.totalorder %v327, 2
        %vm329 = vcmp.eq.s32.totalorder %v327, 0
        %v330 = vxor.u32 %v324, 2147483648
        %v331 = vsel %vm329, %v316, %v330
        %vm332 = vcmp.eq.s32.totalorder %v327, 2
        %v333 = vxor.u32 %v316, 2147483648
        %v334 = vsel %vm332, %v333, %v324
        %v335 = vsel %vm328, %v331, %v334
        %v336 = vsel %vm325, nan, %v335
        %v337 = vand.u32 2147483647, %v181
        %vm338 = vcmp.le.f32.partialorder %v337, 0.7853982
        %vm339 = vcmp.lt.s32.totalorder %v181, 0
        %v340 = vand.u32 %v181, 2139095040
        %v341 = vshrl.u32 %v340, 23
        %v342 = vsub.s32 %v341, 127
        %v343 = vand.u32 2147483647, %v181
        %v344 = vand.u32 %v343, 8388607
        %v345 = vor.u32 %v344, 8388608
        %v346 = vsub.s32 0, %v345
        %v347 = vadd.s32 %v342, 1
        %vm348 = vcmp.gt.s32.totalorder %v347, 0
        %v349 = vsel %vm348, %v347, 0
        %v350 = vshrl.u32 %v349, 5
        %v351 = vand.u32 %v349, 31
        %v352 = vsub.s32 32, %v351
        %v353 = vshrl.u32 683565275, %v352
        %v354 = vshll.u32 683565275, %v351
        %v355 = vshrl.u32 2475754826, %v352
        %v356 = vor.u32 %v354, %v355
        %v357 = vshll.u32 2475754826, %v351
        %v358 = vshrl.u32 2131351028, %v352
        %v359 = vor.u32 %v357, %v358
        %v360 = vshll.u32 2131351028, %v351
        %v361 = vshrl.u32 2102212464, %v352
        %v362 = vor.u32 %v360, %v361
        %v363 = vshll.u32 2102212464, %v351
        %v364 = vshrl.u32 920167782, %v352
        %v365 = vor.u32 %v363, %v364
        %v366 = vshll.u32 920167782, %v351
        %v367 = vshrl.u32 1326507024, %v352
        %v368 = vor.u32 %v366, %v367
        %vm369 = vcmp.lt.s32.totalorder %v350, 1
        %vm370 = vcmp.lt.s32.totalorder %v350, 2
        %vm371 = vcmp.lt.s32.totalorder %v350, 3
        %vm372 = vcmp.lt.s32.totalorder %v350, 4
        %v373 = vsel %vm369, %v353, %v356
        %v374 = vsel %vm372, %v362, 2102212464
        %v375 = vsel %vm371, %v359, %v374
        %v376 = vsel %vm370, %v373, %v375
        %v377 = vsel %vm369, %v356, %v359
        %v378 = vsel %vm372, %v365, 920167782
        %v379 = vsel %vm371, %v362, %v378
        %v380 = vsel %vm370, %v377, %v379
        %v381 = vsel %vm369, %v359, %v362
        %v382 = vsel %vm372, %v368, 1326507024
        %v383 = vsel %vm371, %v365, %v382
        %v384 = vsel %vm370, %v381, %v383
        %v385 = vshll.u32 %v345, 8
        %v386 = vand.u32 %v385, 65535
        %v387 = vshrl.u32 %v385, 16
        %v388 = vand.u32 %v384, 65535
        %v389 = vshrl.u32 %v384, 16
        %v390 = vmul.u32 %v386, %v388
        %v391 = vmul.u32 %v386, %v389
        %v392 = vmul.u32 %v387, %v388
        %v393 = vmul.u32 %v387, %v389
        %v394 = vshll.u32 %v391, 16
        %v395 = vshrl.u32 %v391, 16
        %v396 = vshll.u32 %v392, 16
        %v397 = vshrl.u32 %v392, 16
        %vm398 = vc.u32 %v390, %v394
        %v399 = vsel %vm398, 1, 0
        %v400 = vadd.s32 %v390, %v394
        %v401 = vadd.s32 %v393, %v399
        %vm402 = vc.u32 %v400, %v396
        %v403 = vsel %vm402, 1, 0
        %v404 = vadd.s32 %v400, %v396
        %v405 = vadd.s32 %v401, %v403
        %v406 = vadd.s32 %v405, %v395
        %v407 = vadd.s32 %v406, %v397
        %v408 = vand.u32 %v385, 65535
        %v409 = vshrl.u32 %v385, 16
        %v410 = vand.u32 %v380, 65535
        %v411 = vshrl.u32 %v380, 16
        %v412 = vmul.u32 %v408, %v410
        %v413 = vmul.u32 %v408, %v411
        %v414 = vmul.u32 %v409, %v410
        %v415 = vmul.u32 %v409, %v411
        %v416 = vshll.u32 %v413, 16
        %v417 = vshrl.u32 %v413, 16
        %v418 = vshll.u32 %v414, 16
        %v419 = vshrl.u32 %v414, 16
        %vm420 = vc.u32 %v412, %v416
        %v421 = vsel %vm420, 1, 0
        %v422 = vadd.s32 %v412, %v416
        %v423 = vadd.s32 %v415, %v421
        %vm424 = vc.u32 %v422, %v418
        %v425 = vsel %vm424, 1, 0
        %v426 = vadd.s32 %v422, %v418
        %v427 = vadd.s32 %v423, %v425
        %v428 = vadd.s32 %v427, %v417
        %v429 = vadd.s32 %v428, %v419
        %v430 = vmul.u32 %v385, %v376
        %v431 = vadd.s32 %v407, %v426
        %vm432 = vc.u32 %v407, %v426
        %v433 = vadd.s32 %v429, 1
        %v434 = vsel %vm432, %v433, %v429
        %v435 = vadd.s32 %v430, %v434
        %v436 = vadd.s32 %v435, 536870912
        %v437 = vshrl.u32 %v436, 30
        %v438 = vshll.u32 %v437, 30
        %v439 = vsub.s32 %v435, %v438
        %vm440 = vcmp.lt.s32.totalorder %v439, 0
        %v441 = vsub.s32 0, %v439
        %v442 = vsel %vm440, %v441, %v439
        %v443 = vclz %v442
        %v444 = vsub.s32 %v443, 2
        %vm445 = vcmp.gt.s32.totalorder 0, %v444
        %v446 = vsel %vm445, 0, %v444
        %v447 = vsub.s32 32, %v446
        %v448 = vshll.u32 %v439, %v446
        %v449 = vshrl.u32 %v431, %v447
        %v450 = vor.u32 %v448, %v449
        %v451 = vsub.s32 4294967266, %v446
        %v452 = vadd.s32 %v451, 127
        %v453 = vshll.u32 %v452, 23
        %v454 = vor.u32 4788187, %v453
        %v455 = vand.u32 2147483647, %v454
        %v457 = vcvt.s32.f32 %v450
        %v458 = vmul.f32 %v457, %v455
        %v459 = vxor.u32 %v458, 2147483648
        %v460 = vsel %vm339, %v459, %v458
        %v461 = vsub.s32 4, %v437
        %v462 = vsel %vm339, %v461, %v437
        %v463 = vsel %vm338, %v181, %v460
        %v464 = vsel %vm338, 0, %v462
        %v465 = vmul.f32 %v463, %v463
        %v466 = vmul.f32 %v465, -0.001358992
        %v467 = vadd.f32 %v466, 0.041655596
        %v468 = vmul.f32 %v465, %v467
        %v469 = vadd.f32 %v468, -0.4999988
        %v470 = vmul.f32 %v465, %v469
        %v471 = vadd.f32 1.0, %v470
        %v472 = vmul.f32 %v463, %v463
        %v473 = vmul.f32 %v472, -0.00019511016
        %v474 = vadd.f32 %v473, 0.008332121
        %v475 = vmul.f32 %v472, %v474
        %v476 = vadd.f32 %v475, -0.16666654
        %v477 = vmul.f32 %v472, %v476
        %v478 = vadd.f32 %v477, 1.0
        %v479 = vmul.f32 %v478, %v463
        %vm480 = vweird.f32 %v181
        %v481 = vand.u32 %v464, 3
        %vm482 = vcmp.lt.s32.totalorder %v481, 2
        %vm483 = vcmp.eq.s32.totalorder %v481, 0
        %v484 = vxor.u32 %v479, 2147483648
        %v485 = vsel %vm483, %v471, %v484
        %vm486 = vcmp.eq.s32.totalorder %v481, 2
        %v487 = vxor.u32 %v471, 2147483648
        %v488 = vsel %vm486, %v487, %v479
        %v489 = vsel %vm482, %v485, %v488
        %v490 = vsel %vm480, nan, %v489
        %v491 = vmul.f32 %v336, 2.0
        %v492 = vmul.f32 %v491, %v490
        %v493 = vmul.f32 %v490, 2.0
        %v494 = vmul.f32 %v493, %v490
        %v495 = vsub.f32 %v494, 1.0
        %v496 = vmul.f32 %v492, 2.0
        %v497 = vmul.f32 %v496, %v495
        %v498 = vmul.f32 %v495, 2.0
        %v499 = vmul.f32 %v498, %v495
        %v500 = vsub.f32 %v499, 1.0
        %v501 = vmul.f32 %v497, 2.0
        %v502 = vmul.f32 %v501, %v500
        %v503 = vmul.f32 %v500, 2.0
        %v504 = vmul.f32 %v503, %v500
        %v505 = vsub.f32 %v504, 1.0
        %v506 = vmul.f32 %v502, 2.0
        %v507 = vmul.f32 %v506, %v505
        %v508 = vmul.f32 %v505, 2.0
        %v509 = vmul.f32 %v508, %v505
        %v510 = vsub.f32 %v509, 1.0
        %v511 = vmul.f32 %v507, 2.0
        %v512 = vmul.f32 %v511, %v510
        %v513 = vmul.f32 %v510, 2.0
        %v514 = vmul.f32 %v513, %v510
        %v515 = vsub.f32 %v514, 1.0
        %v516 = vmul.f32 %v512, 2.0
        %v517 = vmul.f32 %v516, %v515
        %v518 = vmul.f32 %v515, 2.0
        %v519 = vmul.f32 %v518, %v515
        %v520 = vsub.f32 %v519, 1.0
        %v521 = vmul.f32 %v517, 2.0
        %v522 = vmul.f32 %v521, %v520
        %v523 = vmul.f32 %v520, 2.0
        %v524 = vmul.f32 %v523, %v520
        %v525 = vsub.f32 %v524, 1.0
        %v527 = vrot.slane %v336, 1
        %v528 = vrot.slane %v336, 2
        %v529 = vrot.slane %v336, 3
        %v534 = vrot.slane %v492, 1
        %v535 = vrot.slane %v492, 2
        %v536 = vrot.slane %v492, 3
        %v538 = vrot.slane %v497, 1
        %v539 = vrot.slane %v497, 2
        %v540 = vrot.slane %v497, 3
        %v542 = vrot.slane %v502, 1
        %v543 = vrot.slane %v502, 2
        %v544 = vrot.slane %v502, 3
        %v546 = vrot.slane %v507, 1
        %v547 = vrot.slane %v507, 2
        %v548 = vrot.slane %v507, 3
        %v550 = vrot.slane %v512, 1
        %v551 = vrot.slane %v512, 2
        %v552 = vrot.slane %v512, 3
        %v554 = vrot.slane %v517, 1
        %v555 = vrot.slane %v517, 2
        %v556 = vrot.slane %v517, 3
        %v558 = vrot.slane %v522, 1
        %v559 = vrot.slane %v522, 2
        %v560 = vrot.slane %v522, 3
        %v561 = vperm.slane %v492, 0
        %v562 = vperm.slane %v534, 0
        %v563 = vperm.slane %v535, 0
        %v564 = vperm.slane %v536, 0
        %v569 = vperm.slane %v497, 0
        %v570 = vperm.slane %v538, 0
        %v571 = vperm.slane %v539, 0
        %v572 = vperm.slane %v540, 0
        %v577 = vperm.slane %v502, 0
        %v578 = vperm.slane %v542, 0
        %v579 = vperm.slane %v543, 0
        %v580 = vperm.slane %v544, 0
        %v585 = vperm.slane %v507, 0
        %v586 = vperm.slane %v546, 0
        %v587 = vperm.slane %v547, 0
        %v588 = vperm.slane %v548, 0
        %v593 = vperm.slane %v512, 0
        %v594 = vperm.slane %v550, 0
        %v595 = vperm.slane %v551, 0
        %v596 = vperm.slane %v552, 0
        %v601 = vperm.slane %v517, 0
        %v602 = vperm.slane %v554, 0
        %v603 = vperm.slane %v555, 0
        %v604 = vperm.slane %v556, 0
        %v609 = vperm.slane %v522, 0
        %v610 = vperm.slane %v558, 0
        %v611 = vperm.slane %v559, 0
        %v612 = vperm.slane %v560, 0
        %vm617 = vcmask 1040384
        %v618 = vsel %vm617, %v336, %v561
        %v619 = vsel %vm617, %v527, %v562
        %v620 = vsel %vm617, %v528, %v563
        %v621 = vsel %vm617, %v529, %v564
        %vm622 = vcmask 1041408
        %v623 = vsel %vm622, %v618, %v569
        %v624 = vsel %vm622, %v619, %v570
        %v625 = vsel %vm622, %v620, %v571
        %v626 = vsel %vm622, %v621, %v572
        %vm627 = vcmask 1042432
        %v628 = vsel %vm627, %v623, %v577
        %v629 = vsel %vm627, %v624, %v578
        %v630 = vsel %vm627, %v625, %v579
        %v631 = vsel %vm627, %v626, %v580
        %vm632 = vcmask 1043456
        %v633 = vsel %vm632, %v628, %v585
        %v634 = vsel %vm632, %v629, %v586
        %v635 = vsel %vm632, %v630, %v587
        %v636 = vsel %vm632, %v631, %v588
        %vm637 = vcmask 1044480
        %v638 = vsel %vm637, %v633, %v593
        %v639 = vsel %vm637, %v634, %v594
        %v640 = vsel %vm637, %v635, %v595
        %v641 = vsel %vm637, %v636, %v596
        %vm642 = vcmask 1045504
        %v643 = vsel %vm642, %v638, %v601
        %v644 = vsel %vm642, %v639, %v602
        %v645 = vsel %vm642, %v640, %v603
        %v646 = vsel %vm642, %v641, %v604
        %vm647 = vcmask 1046528
        %v648 = vsel %vm647, %v643, %v609
        %v649 = vsel %vm647, %v644, %v610
        %v650 = vsel %vm647, %v645, %v611
        %v651 = vsel %vm647, %v646, %v612
        %v653 = vrot.slane %v490, 1
        %v654 = vrot.slane %v490, 2
        %v655 = vrot.slane %v490, 3
        %v660 = vrot.slane %v495, 1
        %v661 = vrot.slane %v495, 2
        %v662 = vrot.slane %v495, 3
        %v664 = vrot.slane %v500, 1
        %v665 = vrot.slane %v500, 2
        %v666 = vrot.slane %v500, 3
        %v668 = vrot.slane %v505, 1
        %v669 = vrot.slane %v505, 2
        %v670 = vrot.slane %v505, 3
        %v672 = vrot.slane %v510, 1
        %v673 = vrot.slane %v510, 2
        %v674 = vrot.slane %v510, 3
        %v676 = vrot.slane %v515, 1
        %v677 = vrot.slane %v515, 2
        %v678 = vrot.slane %v515, 3
        %v680 = vrot.slane %v520, 1
        %v681 = vrot.slane %v520, 2
        %v682 = vrot.slane %v520, 3
        %v684 = vrot.slane %v525, 1
        %v685 = vrot.slane %v525, 2
        %v686 = vrot.slane %v525, 3
        %v687 = vperm.slane %v495, 0
        %v688 = vperm.slane %v660, 0
        %v689 = vperm.slane %v661, 0
        %v690 = vperm.slane %v662, 0
        %v695 = vperm.slane %v500, 0
        %v696 = vperm.slane %v664, 0
        %v697 = vperm.slane %v665, 0
        %v698 = vperm.slane %v666, 0
        %v703 = vperm.slane %v505, 0
        %v704 = vperm.slane %v668, 0
        %v705 = vperm.slane %v669, 0
        %v706 = vperm.slane %v670, 0
        %v711 = vperm.slane %v510, 0
        %v712 = vperm.slane %v672, 0
        %v713 = vperm.slane %v673, 0
        %v714 = vperm.slane %v674, 0
        %v719 = vperm.slane %v515, 0
        %v720 = vperm.slane %v676, 0
        %v721 = vperm.slane %v677, 0
        %v722 = vperm.slane %v678, 0
        %v727 = vperm.slane %v520, 0
        %v728 = vperm.slane %v680, 0
        %v729 = vperm.slane %v681, 0
        %v730 = vperm.slane %v682, 0
        %v735 = vperm.slane %v525, 0
        %v736 = vperm.slane %v684, 0
        %v737 = vperm.slane %v685, 0
        %v738 = vperm.slane %v686, 0
        %v743 = vsel %vm617, %v490, %v687
        %v744 = vsel %vm617, %v653, %v688
        %v745 = vsel %vm617, %v654, %v689
        %v746 = vsel %vm617, %v655, %v690
        %v747 = vsel %vm622, %v743, %v695
        %v748 = vsel %vm622, %v744, %v696
        %v749 = vsel %vm622, %v745, %v697
        %v750 = vsel %vm622, %v746, %v698
        %v751 = vsel %vm627, %v747, %v703
        %v752 = vsel %vm627, %v748, %v704
        %v753 = vsel %vm627, %v749, %v705
        %v754 = vsel %vm627, %v750, %v706
        %v755 = vsel %vm632, %v751, %v711
        %v756 = vsel %vm632, %v752, %v712
        %v757 = vsel %vm632, %v753, %v713
        %v758 = vsel %vm632, %v754, %v714
        %v759 = vsel %vm637, %v755, %v719
        %v760 = vsel %vm637, %v756, %v720
        %v761 = vsel %vm637, %v757, %v721
        %v762 = vsel %vm637, %v758, %v722
        %v763 = vsel %vm642, %v759, %v727
        %v764 = vsel %vm642, %v760, %v728
        %v765 = vsel %vm642, %v761, %v729
        %v766 = vsel %vm642, %v762, %v730
        %v767 = vsel %vm647, %v763, %v735
        %v768 = vsel %vm647, %v764, %v736
        %v769 = vsel %vm647, %v765, %v737
        %v770 = vsel %vm647, %v766, %v738
        %vm771 = vcmask 130048
        %772 = vst.msk [vmem:[%s178] sm:$0xff] %vm771, %v648
        %773 = vst.msk [vmem:[%s178 + $0x8] sm:$0xff] %vm771, %v649
        %774 = vst.msk [vmem:[%s178 + $0x10] sm:$0xff] %vm771, %v650
        %775 = vst.msk [vmem:[%s178 + $0x18] sm:$0xff] %vm771, %v651
        %s776 = scalar_lea.vmem %s178, 32
        %777 = vst.msk [vmem:[%s776] sm:$0xff] %vm771, %v767
        %778 = vst.msk [vmem:[%s776 + $0x8] sm:$0xff] %vm771, %v768
        %779 = vst.msk [vmem:[%s776 + $0x10] sm:$0xff] %vm771, %v769
        %780 = vst.msk [vmem:[%s776 + $0x18] sm:$0xff] %vm771, %v770
        %s781 = smul.u32 4, %s21
        %p782 = scmp.lt.s32.totalorder %s20, 1
        %s783 = scalar_select %p782, %s20, 1
        %p784 = scmp.lt.s32.totalorder %s781, 3
        %s785 = scalar_select %p784, %s781, 3
        %p786 = scmp.lt.s32.totalorder %s22, 0
        %s787 = scalar_select %p786, %s22, 0
        %s788 = sadd.s32 %s787, %s785
        %s789 = smul.addr %s783, 8
        %s790 = sadd.s32 %s788, %s789
        %s791 = smul.addr %s790, 8
        %s792 = scalar_lea.vmem %s1, %s791
        // Predicated region
        $region29: #{tpu_custom_call.1} parent=23 // pred_check
          %p793 = pneg %p86
        $region30: #{tpu_custom_call.1} parent=23 // pred_check_branch
          %795 = sbr.rel (%p793) target = $region32
        $region31: #{tpu_custom_call.1} parent=23 // pred_region
          %s796 = smul.u32 4, %s21
        $region32: #{tpu_custom_call.1} parent=23 // pred_fallthru
          _
      $region24: #{tpu_custom_call.1} parent=5 // pred_fallthru
        _
      %p797 = scmp.le.s32.totalorder 2, %s10
      // Predicated region
      $region33: #{tpu_custom_call.1} parent=5 // pred_check
        %p798 = pneg %p797
      $region34: #{tpu_custom_call.1} parent=5 // pred_check_branch
        %800 = sbr.rel (%p798) target = $region36
      $region35: #{tpu_custom_call.1} parent=5 // pred_region
        %s801 = ssub.s32 %s10, 2
        // Predicated region
        $region37: #{tpu_custom_call.1} parent=35 // pred_check
          %p802 = pneg %p92
        $region38: #{tpu_custom_call.1} parent=35 // pred_check_branch
          %804 = sbr.rel (%p802) target = $region40
        $region39: #{tpu_custom_call.1} parent=35 // pred_region
          %s805 = smul.u32 4, %s24
          %p806 = scmp.lt.s32.totalorder %s23, 1
          %s807 = scalar_select %p806, %s23, 1
          %p808 = scmp.lt.s32.totalorder %s805, 3
          %s809 = scalar_select %p808, %s805, 3
          %p810 = scmp.lt.s32.totalorder %s25, 0
          %s811 = scalar_select %p810, %s25, 0
          %s812 = sadd.s32 %s811, %s809
          %s813 = smul.addr %s807, 8
          %s814 = sadd.s32 %s812, %s813
          %s815 = smul.addr %s814, 8
          %s816 = scalar_lea.vmem %s1, %s815
        $region40: #{tpu_custom_call.1} parent=35 // pred_fallthru
          _
      $region36: #{tpu_custom_call.1} parent=5 // pred_fallthru
        _
    $region6: #{tpu_custom_call.1} parent=1 // loop_footer
      %s14 = sadd.s32 1, %s10
    $region7: #{tpu_custom_call.1} parent=1 // loop_footer_branch
      %9 = sbr.rel target = $region3
    $region8: #{tpu_custom_call.1} parent=1 // loop_exit
      _
    %817 = vsyncpa [#allocation3], 1
    %s818 = scalar_lea.sflag [#allocation3], 1
    %819 = vsyncpa %s818, 1

</llo_original>
